<compile_context>
chip_gen: v7x
topology: tpu7x:2x2x1
jax: 0.10.0
libtpu: 0.0.40
codegen_flags: <defaults>
</compile_context>

<pallas_src>
import functools

import jax
import jax.numpy as jnp
from jax import lax
from jax.experimental import pallas as pl
from jax.experimental.pallas import tpu as pltpu


_CHUNK = 512  # rows per in-kernel sub-block: bounds live f32 intermediates to
              # ~3*_CHUNK*D*4 bytes regardless of how large the DMA row tile tm is.


def _mahalanobis_kernel(x_ref, mean_ref, icov_t_ref, o_ref, *, chunk, n_chunks):
    """Per-row Mahalanobis quadratic form for one (tm, D) row tile.

    x_ref:      (tm, D)  native dtype (f32 / bf16) -- upcast in-kernel
    mean_ref:   (1, D)   f32, grid-invariant (single-buffered)
    icov_t_ref: (D, D)   inv_obj_cov^T, grid-invariant (f32 or bf16, single-buffered)
    o_ref:      (tm, 1)  f32
    """
    mean = mean_ref[...]
    icov_t = icov_t_ref[...]

    def body(c, carry):
        r0 = pl.multiple_of(c * chunk, 128)
        xb = x_ref[pl.ds(r0, chunk), :]
        diff = xb.astype(jnp.float32) - mean                      # (chunk, D) f32 VPU
        # torch.matmul(inv_cov, diff.T).T == diff @ inv_cov.T ; the DxD transpose is
        # hoisted to the wrapper so the MXU gets its operand directly every step.
        t = jnp.dot(diff.astype(icov_t.dtype), icov_t,
                    preferred_element_type=jnp.float32)           # (chunk, D) f32 acc
        o_ref[pl.ds(r0, chunk), :] = jnp.sum(diff * t, axis=-1, keepdims=True)
        return carry

    lax.fori_loop(0, n_chunks, body, 0, unroll=n_chunks <= 8)


def _vmem_capacity_bytes():
    try:
        return int(pltpu.get_tpu_info().vmem_capacity_bytes)
    except Exception:
        return 64 << 20  # v7x per-core size: safe lower bound for every generation


def _choose_tiling(m_rows, d, x_itemsize, icov_itemsize):
    """Pick (tm, chunk, x_bufs) sized in bytes against the device VMEM budget."""
    capacity = _vmem_capacity_bytes()
    budget = max(capacity - (16 << 20), 24 << 20)     # headroom for compiler scratch
    x_bufs = 2                                        # double-buffered x tiles
    fixed = (d * d * icov_itemsize                    # inv_cov^T, Buffered(1)
             + d * 4                                  # mean, Buffered(1)
             + 3 * _CHUNK * d * 4                     # in-kernel f32 intermediates
             + (4 << 20))                             # slack
    per_row = x_bufs * d * x_itemsize + 2 * 4         # x tile buffers + (tm,1) output
    tm = (budget - fixed) // per_row
    tm = int(max(128, min(tm, 8192)))
    tm = min(tm, -(-m_rows // 128) * 128)             # never exceed the problem size
    if m_rows > 256:                                  # keep >=2 grid steps (v7x: 2 TCs)
        half = -(-((m_rows + 1) // 2) // 128) * 128
        tm = min(tm, max(128, half))
    if tm >= _CHUNK:
        tm -= tm % _CHUNK                             # so tm % chunk == 0
    else:
        tm -= tm % 128
    tm = max(128, tm)
    chunk = min(tm, _CHUNK)
    return tm, chunk, x_bufs, capacity


@functools.partial(
    jax.jit,
    static_argnames=("tm", "chunk", "x_bufs", "use_bf16", "vmem_capacity",
                     "single_buffer_consts"))
def _forward_impl(x, obj_mean, inv_obj_cov, *, tm, chunk, x_bufs, use_bf16,
                  vmem_capacity, single_buffer_consts):
    B, N, D = x.shape
    M = B * N

    x2d = x.reshape(M, D)                              # native dtype, no HBM copy
    mean2d = obj_mean.reshape(1, D).astype(jnp.float32)
    icov_dtype = jnp.bfloat16 if use_bf16 else jnp.float32
    icov_t = inv_obj_cov.T.astype(icov_dtype)          # hoisted transpose, once per call

    grid = -(-M // tm)  # cdiv; ragged last block reads garbage rows that get dropped

    x_itemsize = x2d.dtype.itemsize
    flops = 2 * M * D * D + 3 * M * D
    bytes_accessed = M * D * x_itemsize + D * D * icov_t.dtype.itemsize + 4 * D + 4 * M
    needed_vmem = (x_bufs * tm * D * x_itemsize        # pipelined x tiles
                   + 2 * tm * 4                        # pipelined (tm, 1) output
                   + D * D * icov_t.dtype.itemsize + D * 4   # resident constants
                   + 3 * chunk * D * 4                 # in-kernel f32 intermediates
                   + (4 << 20))                        # compiler scratch slack
    vmem_limit = int(min(vmem_capacity - (8 << 20), max(32 << 20, needed_vmem)))

    buffered_once = {"pipeline_mode": pl.Buffered(1)} if single_buffer_consts else {}

    out = pl.pallas_call(
        functools.partial(_mahalanobis_kernel, chunk=chunk, n_chunks=tm // chunk),
        out_shape=jax.ShapeDtypeStruct((M, 1), jnp.float32),
        grid_spec=pltpu.PrefetchScalarGridSpec(
            num_scalar_prefetch=0,
            grid=(grid,),
            in_specs=[
                pl.BlockSpec((tm, D), lambda i: (i, 0)),              # big x row tile
                pl.BlockSpec((1, D), lambda i: (0, 0), **buffered_once),   # mean
                pl.BlockSpec((D, D), lambda i: (0, 0), **buffered_once),   # inv_cov^T
            ],
            out_specs=pl.BlockSpec((tm, 1), lambda i: (i, 0)),
        ),
        compiler_params=pltpu.CompilerParams(
            dimension_semantics=("parallel",),
            vmem_limit_bytes=vmem_limit,
        ),
        cost_estimate=pl.CostEstimate(
            flops=flops, transcendentals=0, bytes_accessed=bytes_accessed),
    )(x2d, mean2d, icov_t)

    return out.reshape(B, N)


def full_prob_objectness_forward(x, obj_mean, inv_obj_cov, use_bf16_matmul=None):
    """Eval-mode forward of FullProbObjectnessHead.  x: (B, N, D). Returns (B, N)."""
    B, N, D = x.shape
    if use_bf16_matmul is None:
        # bf16 MXU operands pay off (~3x fewer pushes, half the resident icov VMEM)
        # once the kernel is MXU-bound; at small D it is DMA/overhead-bound and f32
        # keeps full accuracy.
        use_bf16_matmul = D >= 256
    icov_itemsize = 2 if use_bf16_matmul else 4
    tm, chunk, x_bufs, capacity = _choose_tiling(
        B * N, D, jnp.dtype(x.dtype).itemsize, icov_itemsize)
    try:
        return _forward_impl(x, obj_mean, inv_obj_cov, tm=tm, chunk=chunk,
                             x_bufs=x_bufs, use_bf16=use_bf16_matmul,
                             vmem_capacity=capacity, single_buffer_consts=True)
    except Exception:
        # Fallback if Buffered(1) single-buffering of grid-invariant operands is not
        # supported by this JAX/Mosaic version; everything else stays identical.
        return _forward_impl(x, obj_mean, inv_obj_cov, tm=tm, chunk=chunk,
                             x_bufs=x_bufs, use_bf16=use_bf16_matmul,
                             vmem_capacity=capacity, single_buffer_consts=False)


def _reference(x, obj_mean, inv_obj_cov):
    B, N, D = x.shape
    xf = x.reshape(B * N, D).astype(jnp.float32)
    diff = xf - obj_mean[None, :].astype(jnp.float32)
    m = jnp.sum(diff * (diff @ inv_obj_cov.astype(jnp.float32).T), axis=-1)
    return m.reshape(B, N)


# TODO(synk): training-path updates (update_parameters / update_icov: running mean,
# torch.cov, matrix inverse) are host/XLA-side bookkeeping and are not implemented
# as Pallas kernels; only the forward (mahalanobis) path is kernelized.

if __name__ == "__main__":
    hidden_dim = 32
    B, N = 2, 8  # x: (B, N, hidden_dim)

    key = jax.random.PRNGKey(0)
    kx, km, kc, kx2, kc2, kx3 = jax.random.split(key, 6)

    x = jax.random.normal(kx, (B, N, hidden_dim), dtype=jnp.float32)
    obj_mean = 0.1 * jax.random.normal(km, (hidden_dim,), dtype=jnp.float32)
    a = 0.05 * jax.random.normal(kc, (hidden_dim, hidden_dim), dtype=jnp.float32)
    inv_obj_cov = jnp.eye(hidden_dim, dtype=jnp.float32) + 0.5 * (a + a.T)

    # Tolerances account for the TPU MXU's bf16-pass handling of f32 matmuls
    # (both kernel and XLA reference may round mantissas); values here are O(30).
    TOL = dict(atol=1e-2, rtol=1e-2)

    out = jax.block_until_ready(full_prob_objectness_forward(x, obj_mean, inv_obj_cov))
    ref = _reference(x, obj_mean, inv_obj_cov)
    assert out.shape == (B, N)
    assert jnp.allclose(out, ref, **TOL), (out, ref)

    # Ragged row count (M=21, not a multiple of the 128-row tile) with a deliberately
    # NON-symmetric inv_obj_cov: validates the hoisted transpose and that the
    # OOB/garbage tail of the last block stays confined to dropped rows.
    B2, N2 = 3, 7
    x2 = jax.random.normal(kx2, (B2, N2, hidden_dim), dtype=jnp.float32)
    inv2 = jnp.eye(hidden_dim, dtype=jnp.float32) + 0.05 * jax.random.normal(
        kc2, (hidden_dim, hidden_dim), dtype=jnp.float32)
    out2 = jax.block_until_ready(full_prob_objectness_forward(x2, obj_mean, inv2))
    ref2 = _reference(x2, obj_mean, inv2)
    assert out2.shape == (B2, N2)
    assert jnp.allclose(out2, ref2, **TOL), (out2, ref2)

    # bf16 activations: streamed in native dtype (half the HBM bytes) and upcast
    # inside the kernel; reference is computed on the same bf16-rounded values.
    x3 = jax.random.normal(kx3, (B, N, hidden_dim), dtype=jnp.float32).astype(jnp.bfloat16)
    out3 = jax.block_until_ready(full_prob_objectness_forward(x3, obj_mean, inv_obj_cov))
    ref3 = _reference(x3.astype(jnp.float32), obj_mean, inv_obj_cov)
    assert out3.shape == (B, N)
    assert jnp.allclose(out3, ref3, **TOL), (out3, ref3)

    print("KERNEL_OK")
</pallas_src>

<mosaic_0001>
module attributes {stable_mosaic.version = 11 : i64} {
  func.func @_mahalanobis_kernel(%arg0: i32, %arg1: memref<128x32xf32, #tpu.memory_space<vmem>>, %arg2: memref<1x32xf32, #tpu.memory_space<vmem>>, %arg3: memref<32x32xf32, #tpu.memory_space<vmem>>, %arg4: memref<128x1xf32, #tpu.memory_space<vmem>>) attributes {dimension_semantics = [#tpu.dimension_semantics<parallel>], iteration_bounds = array<i64: 1>, scalar_prefetch = 0 : i64, scratch_operands = 0 : i64, tpu.core_type = #tpu.core_type<tc>, window_params = [{transform_indices = @transform_0, window_bounds = array<i64: 128, 32>}, {pipeline_mode = #tpu.pipeline_mode<synchronous>, transform_indices = @transform_1, window_bounds = array<i64: 1, 32>}, {pipeline_mode = #tpu.pipeline_mode<synchronous>, transform_indices = @transform_2, window_bounds = array<i64: 32, 32>}, {transform_indices = @transform_3, window_bounds = array<i64: 128, 1>}]} {
    %c0 = arith.constant 0 : index
    %c0_0 = arith.constant 0 : index
    %0 = vector.load %arg2[%c0, %c0_0] : memref<1x32xf32, #tpu.memory_space<vmem>>, vector<1x32xf32>
    %c0_1 = arith.constant 0 : index
    %c0_2 = arith.constant 0 : index
    %1 = vector.load %arg3[%c0_1, %c0_2] : memref<32x32xf32, #tpu.memory_space<vmem>>, vector<32x32xf32>
    %c0_i32 = arith.constant 0 : i32
    %c128_i32 = arith.constant 128 : i32
    %2 = arith.muli %c0_i32, %c128_i32 : i32
    %3 = tpu.assume_multiple %2, 128 : i32
    %4 = arith.index_cast %3 : i32 to index
    %c0_3 = arith.constant 0 : index
    %5 = vector.load %arg1[%4, %c0_3] : memref<128x32xf32, #tpu.memory_space<vmem>>, vector<128x32xf32>
    %6 = vector.broadcast %0 : vector<1x32xf32> to vector<128x32xf32>
    %7 = arith.subf %5, %6 : vector<128x32xf32>
    %cst = arith.constant dense<0.000000e+00> : vector<128x32xf32>
    %8 = tpu.matmul %7, %1, %cst {dimension_numbers = #tpu.dot_dimension_numbers<[1], [0], [0], [1], [0, 0, 1, 1], [], []>} : vector<128x32xf32>, vector<32x32xf32>, vector<128x32xf32> -> vector<128x32xf32>
    %9 = arith.mulf %7, %8 : vector<128x32xf32>
    %cst_4 = arith.constant dense<0.000000e+00> : vector<128xf32>
    %10 = vector.multi_reduction <add>, %9, %cst_4 [1] : vector<128x32xf32> to vector<128xf32>
    %11 = vector.shape_cast %10 : vector<128xf32> to vector<128x1xf32>
    %12 = arith.index_cast %3 : i32 to index
    %c0_5 = arith.constant 0 : index
    %13 = vector.load %arg4[%12, %c0_5] : memref<128x1xf32, #tpu.memory_space<vmem>>, vector<128x1xf32>
    tpu.vector_store %arg4[%12, %c0_5], %11 {strides = array<i32>} : memref<128x1xf32, #tpu.memory_space<vmem>>, vector<128x1xf32>,
    %c1_i32 = arith.constant 1 : i32
    return
  }
  func.func @transform_0(%arg0: i32) -> (i32, i32) {
    %c0_i32 = arith.constant 0 : i32
    %c0_i32_0 = arith.constant 0 : i32
    return %arg0, %c0_i32 : i32, i32
  }
  func.func @transform_1(%arg0: i32) -> (i32, i32) {
    %c0_i32 = arith.constant 0 : i32
    %c0_i32_0 = arith.constant 0 : i32
    %c0_i32_1 = arith.constant 0 : i32
    return %c0_i32, %c0_i32_0 : i32, i32
  }
  func.func @transform_2(%arg0: i32) -> (i32, i32) {
    %c0_i32 = arith.constant 0 : i32
    %c0_i32_0 = arith.constant 0 : i32
    %c0_i32_1 = arith.constant 0 : i32
    return %c0_i32, %c0_i32_0 : i32, i32
  }
  func.func @transform_3(%arg0: i32) -> (i32, i32) {
    %c0_i32 = arith.constant 0 : i32
    %c0_i32_0 = arith.constant 0 : i32
    return %arg0, %c0_i32 : i32, i32
  }
}

module attributes {stable_mosaic.version = 11 : i64} {
  func.func @_mahalanobis_kernel(%arg0: i32, %arg1: memref<128x32xf32, #tpu.memory_space<vmem>>, %arg2: memref<1x32xf32, #tpu.memory_space<vmem>>, %arg3: memref<32x32xf32, #tpu.memory_space<vmem>>, %arg4: memref<128x1xf32, #tpu.memory_space<vmem>>) attributes {dimension_semantics = [#tpu.dimension_semantics<parallel>], iteration_bounds = array<i64: 1>, scalar_prefetch = 0 : i64, scratch_operands = 0 : i64, tpu.core_type = #tpu.core_type<tc>, window_params = [{transform_indices = @transform_0, window_bounds = array<i64: 128, 32>}, {pipeline_mode = #tpu.pipeline_mode<synchronous>, transform_indices = @transform_1, window_bounds = array<i64: 1, 32>}, {pipeline_mode = #tpu.pipeline_mode<synchronous>, transform_indices = @transform_2, window_bounds = array<i64: 32, 32>}, {transform_indices = @transform_3, window_bounds = array<i64: 128, 1>}]} {
    %c0 = arith.constant 0 : index
    %c0_0 = arith.constant 0 : index
    %0 = vector.load %arg2[%c0, %c0_0] : memref<1x32xf32, #tpu.memory_space<vmem>>, vector<1x32xf32>
    %c0_1 = arith.constant 0 : index
    %c0_2 = arith.constant 0 : index
    %1 = vector.load %arg3[%c0_1, %c0_2] : memref<32x32xf32, #tpu.memory_space<vmem>>, vector<32x32xf32>
    %c0_i32 = arith.constant 0 : i32
    %c128_i32 = arith.constant 128 : i32
    %2 = arith.muli %c0_i32, %c128_i32 : i32
    %3 = tpu.assume_multiple %2, 128 : i32
    %4 = arith.index_cast %3 : i32 to index
    %c0_3 = arith.constant 0 : index
    %5 = vector.load %arg1[%4, %c0_3] : memref<128x32xf32, #tpu.memory_space<vmem>>, vector<128x32xf32>
    %6 = vector.broadcast %0 : vector<1x32xf32> to vector<128x32xf32>
    %7 = arith.subf %5, %6 : vector<128x32xf32>
    %cst = arith.constant dense<0.000000e+00> : vector<128x32xf32>
    %8 = tpu.matmul %7, %1, %cst {dimension_numbers = #tpu.dot_dimension_numbers<[1], [0], [0], [1], [0, 0, 1, 1], [], []>} : vector<128x32xf32>, vector<32x32xf32>, vector<128x32xf32> -> vector<128x32xf32>
    %9 = arith.mulf %7, %8 : vector<128x32xf32>
    %cst_4 = arith.constant dense<0.000000e+00> : vector<128xf32>
    %10 = vector.multi_reduction <add>, %9, %cst_4 [1] : vector<128x32xf32> to vector<128xf32>
    %11 = vector.shape_cast %10 : vector<128xf32> to vector<128x1xf32>
    %12 = arith.index_cast %3 : i32 to index
    %c0_5 = arith.constant 0 : index
    %13 = vector.load %arg4[%12, %c0_5] : memref<128x1xf32, #tpu.memory_space<vmem>>, vector<128x1xf32>
    tpu.vector_store %arg4[%12, %c0_5], %11 {strides = array<i32>} : memref<128x1xf32, #tpu.memory_space<vmem>>, vector<128x1xf32>,
    %c1_i32 = arith.constant 1 : i32
    return
  }
  func.func @transform_0(%arg0: i32) -> (i32, i32) {
    %c0_i32 = arith.constant 0 : i32
    %c0_i32_0 = arith.constant 0 : i32
    return %arg0, %c0_i32 : i32, i32
  }
  func.func @transform_1(%arg0: i32) -> (i32, i32) {
    %c0_i32 = arith.constant 0 : i32
    %c0_i32_0 = arith.constant 0 : i32
    %c0_i32_1 = arith.constant 0 : i32
    return %c0_i32, %c0_i32_0 : i32, i32
  }
  func.func @transform_2(%arg0: i32) -> (i32, i32) {
    %c0_i32 = arith.constant 0 : i32
    %c0_i32_0 = arith.constant 0 : i32
    %c0_i32_1 = arith.constant 0 : i32
    return %c0_i32, %c0_i32_0 : i32, i32
  }
  func.func @transform_3(%arg0: i32) -> (i32, i32) {
    %c0_i32 = arith.constant 0 : i32
    %c0_i32_0 = arith.constant 0 : i32
    return %arg0, %c0_i32 : i32, i32
  }
}

</mosaic_0001>

<llo_original>
// kernel: _forward_impl.1
$region0: #{_forward_impl.1}
  #allocation0 [shape = 'u32[]', space=smem, size = 0x4, offset = 0x4, fixed_abs, tag = 'smem constant byte address 0x4 - core index']
  #allocation1 [shape = 'u32[144,128]{1,0:T(1,128)}', space=vmem, size = 0x12000, scoped, tag = 'internal scratch']
  %s0 = inlined_call_operand.vmem [shape: f32[16,32], index: 0, kind: input, shape index: {}]
  %s1 = inlined_call_operand.vmem [shape: f32[1,32], index: 1, kind: input, shape index: {}]
  %s2 = inlined_call_operand.vmem [shape: f32[32,32], index: 2, kind: input, shape index: {}]
  %s3 = inlined_call_operand.vmem [shape: f32[16,1], index: 3, kind: output, shape index: {}]
  %s4 = sld [smem:[#allocation0]]
  $region56: #{_forward_impl.1} parent=0
    _
  %s6 = ssub.s32 1, %s4
  %s7 = scalar_select 0, %s6, %s4
  $region1: #{_forward_impl.1} parent=0
    #allocation2 [shape = 'u8[65536]{0}', space=vmem, size = 0x10000, scoped, tag = 'output window, operand 0, single buffered']
    // Predicated region
    $region2: #{_forward_impl.1} parent=1 // pred_check
      _
    $region3: #{_forward_impl.1} parent=1 // pred_check_branch
      %9 = sbr.rel (0) target = $region5
    $region4: #{_forward_impl.1} parent=1 // pred_region
      _
    $region5: #{_forward_impl.1} parent=1 // pred_fallthru
      _
    // Predicated region
    $region6: #{_forward_impl.1} parent=1 // pred_check
      _
    $region7: #{_forward_impl.1} parent=1 // pred_check_branch
      %11 = sbr.rel (0) target = $region9
    $region8: #{_forward_impl.1} parent=1 // pred_region
      _
    $region9: #{_forward_impl.1} parent=1 // pred_fallthru
      _
    // Predicated region
    $region10: #{_forward_impl.1} parent=1 // pred_check
      _
    $region11: #{_forward_impl.1} parent=1 // pred_check_branch
      %13 = sbr.rel (0) target = $region13
    $region12: #{_forward_impl.1} parent=1 // pred_region
      _
    $region13: #{_forward_impl.1} parent=1 // pred_fallthru
      _
    %v14 = vld [vmem:[%s1] sm:$0x1]
    %v15 = vld [vmem:[%s2] sm:$0xff]
    %v16 = vld [vmem:[%s2 + $0x8] sm:$0xff]
    %v17 = vld [vmem:[%s2 + $0x10] sm:$0xff]
    %v18 = vld [vmem:[%s2 + $0x18] sm:$0xff]
    %v19 = vld [vmem:[%s0] sm:$0xff]
    %v20 = vld [vmem:[%s0 + $0x8] sm:$0xff]
    %v21 = vld [vmem:[%s0 + $0x10] sm:$0xff]
    %v22 = vld [vmem:[%s0 + $0x18] sm:$0xff]
    %v23 = vld [vmem:[%s0 + $0x20] sm:$0xff]
    %v24 = vld [vmem:[%s0 + $0x28] sm:$0xff]
    %v25 = vld [vmem:[%s0 + $0x30] sm:$0xff]
    %v26 = vld [vmem:[%s0 + $0x38] sm:$0xff]
    %v27 = vld [vmem:[%s0 + $0x40] sm:$0xff]
    %v28 = vld [vmem:[%s0 + $0x48] sm:$0xff]
    %v29 = vld [vmem:[%s0 + $0x50] sm:$0xff]
    %v30 = vld [vmem:[%s0 + $0x58] sm:$0xff]
    %v31 = vld [vmem:[%s0 + $0x60] sm:$0xff]
    %v32 = vld [vmem:[%s0 + $0x68] sm:$0xff]
    %v33 = vld [vmem:[%s0 + $0x70] sm:$0xff]
    %v34 = vld [vmem:[%s0 + $0x78] sm:$0xff]
    %v36 = vlaneseq
    %v37 = vshrl.u32 %v36, 7
    %v38 = vsub.s32 0, %v37
    %v39 = vrot.slane %v14, %v38
    %v41 = vsub.f32 %v19, %v39
    %v42 = vsub.f32 %v20, %v39
    %v43 = vsub.f32 %v21, %v39
    %v44 = vsub.f32 %v22, %v39
    %v45 = vsub.f32 %v23, %v39
    %v46 = vsub.f32 %v24, %v39
    %v47 = vsub.f32 %v25, %v39
    %v48 = vsub.f32 %v26, %v39
    %v49 = vsub.f32 %v27, %v39
    %v50 = vsub.f32 %v28, %v39
    %v51 = vsub.f32 %v29, %v39
    %v52 = vsub.f32 %v30, %v39
    %v53 = vsub.f32 %v31, %v39
    %v54 = vsub.f32 %v32, %v39
    %v55 = vsub.f32 %v33, %v39
    %v56 = vsub.f32 %v34, %v39
    %vm57 = vcmask 261120
    %v59 = vsel %vm57, %v41, 0
    %v62 = vsel %vm57, %v42, 0
    %v65 = vsel %vm57, %v43, 0
    %v68 = vsel %vm57, %v44, 0
    %v71 = vsel %vm57, %v45, 0
    %v74 = vsel %vm57, %v46, 0
    %v77 = vsel %vm57, %v47, 0
    %v80 = vsel %vm57, %v48, 0
    %v83 = vsel %vm57, %v49, 0
    %v86 = vsel %vm57, %v50, 0
    %v89 = vsel %vm57, %v51, 0
    %v92 = vsel %vm57, %v52, 0
    %v95 = vsel %vm57, %v53, 0
    %v98 = vsel %vm57, %v54, 0
    %v101 = vsel %vm57, %v55, 0
    %v104 = vsel %vm57, %v56, 0
    %106 = vmatprep.subr.mxu0 0.0
    %107 = vmatpush1.msra.mxu0 %v15
    %108 = vmatprep.subr.mxu0 0.0
    %109 = vmatpush1.msra.mxu0 %v16
    %110 = vmatprep.subr.mxu0 0.0
    %111 = vmatpush1.msra.mxu0 %v17
    %112 = vmatprep.subr.mxu0 0.0
    %113 = vmatpush1.msra.mxu0 %v18
    %114 = vmatprep.subr.mxu0 0.0
    %115 = vmatpush1.msra.mxu0 0.0
    %116 = vmatprep.subr.mxu0 0.0
    %117 = vmatpush1.msra.mxu0 0.0
    %118 = vmatprep.subr.mxu0 0.0
    %119 = vmatpush1.msra.mxu0 0.0
    %120 = vmatprep.subr.mxu0 0.0
    %121 = vmatpush1.msra.mxu0 0.0
    %122 = vmatprep.subr.mxu0 0.0
    %123 = vmatpush1.msra.mxu0 0.0
    %124 = vmatprep.subr.mxu0 0.0
    %125 = vmatpush1.msra.mxu0 0.0
    %126 = vmatprep.subr.mxu0 0.0
    %127 = vmatpush1.msra.mxu0 0.0
    %128 = vmatprep.subr.mxu0 0.0
    %129 = vmatpush1.msra.mxu0 0.0
    %130 = vmatprep.subr.mxu0 0.0
    %131 = vmatpush1.msra.mxu0 0.0
    %132 = vmatprep.subr.mxu0 0.0
    %133 = vmatpush1.msra.mxu0 0.0
    %134 = vmatprep.subr.mxu0 0.0
    %135 = vmatpush1.msra.mxu0 0.0
    %136 = vmatprep.subr.mxu0 0.0
    %137 = vmatpush1.msra.mxu0 0.0
    %138 = vmatprep.subr.mxu0 0.0
    %139 = vmatpush1.msra.mxu0 0.0
    %140 = vmatprep.subr.mxu0 0.0
    %141 = vmatpush1.msra.mxu0 0.0
    %142 = vmatprep.subr.mxu0 0.0
    %143 = vmatpush1.msra.mxu0 0.0
    %144 = vmatprep.subr.mxu0 0.0
    %145 = vmatpush1.msra.mxu0 0.0
    %146 = vmatprep.subr.mxu0 0.0
    %147 = vmatpush1.msra.mxu0 0.0
    %148 = vmatprep.subr.mxu0 0.0
    %149 = vmatpush1.msra.mxu0 0.0
    %150 = vmatprep.subr.mxu0 0.0
    %151 = vmatpush1.msra.mxu0 0.0
    %152 = vmatprep.subr.mxu0 0.0
    %153 = vmatpush1.msra.mxu0 0.0
    %154 = vmatprep.subr.mxu0 0.0
    %155 = vmatpush1.msra.mxu0 0.0
    %156 = vmatprep.subr.mxu0 0.0
    %157 = vmatpush1.msra.mxu0 0.0
    %158 = vmatprep.subr.mxu0 0.0
    %159 = vmatpush1.msra.mxu0 0.0
    %160 = vmatprep.subr.mxu0 0.0
    %161 = vmatpush1.msra.mxu0 0.0
    %162 = vmatprep.subr.mxu0 0.0
    %163 = vmatpush1.msra.mxu0 0.0
    %164 = vmatprep.subr.mxu0 0.0
    %165 = vmatpush1.msra.mxu0 0.0
    %166 = vmatprep.subr.mxu0 0.0
    %167 = vmatpush1.msra.mxu0 0.0
    %168 = vmatprep.subr.mxu0 0.0
    %169 = vmatpush1.msra.mxu0 0.0
    %170 = vmatprep.mubr.f32.mxu0 0.0
    %171 = vmatmul.mubr.f32.gmra.mrb[0].mxu0 %v59
    %v172 = vpop.f32.mrb[0].mxu0
    %v173 = vadd.f32 0.0, %v172
    %v174 = vpop.f32.mrb[0].mxu0
    %175 = vmatprep.mubr.f32.mxu0 0.0
    %176 = vmatmul.mubr.f32.gmra.mrb[0].mxu0 %v62
    %v177 = vpop.f32.mrb[0].mxu0
    %v178 = vadd.f32 0.0, %v177
    %v179 = vpop.f32.mrb[0].mxu0
    %180 = vmatprep.mubr.f32.mxu0 0.0
    %181 = vmatmul.mubr.f32.gmra.mrb[0].mxu0 %v65
    %v182 = vpop.f32.mrb[0].mxu0
    %v183 = vadd.f32 0.0, %v182
    %v184 = vpop.f32.mrb[0].mxu0
    %185 = vmatprep.mubr.f32.mxu0 0.0
    %186 = vmatmul.mubr.f32.gmra.mrb[0].mxu0 %v68
    %v187 = vpop.f32.mrb[0].mxu0
    %v188 = vadd.f32 0.0, %v187
    %v189 = vpop.f32.mrb[0].mxu0
    %190 = vmatprep.mubr.f32.mxu0 0.0
    %191 = vmatmul.mubr.f32.gmra.mrb[0].mxu0 %v71
    %v192 = vpop.f32.mrb[0].mxu0
    %v193 = vadd.f32 0.0, %v192
    %v194 = vpop.f32.mrb[0].mxu0
    %195 = vmatprep.mubr.f32.mxu0 0.0
    %196 = vmatmul.mubr.f32.gmra.mrb[0].mxu0 %v74
    %v197 = vpop.f32.mrb[0].mxu0
    %v198 = vadd.f32 0.0, %v197
    %v199 = vpop.f32.mrb[0].mxu0
    %200 = vmatprep.mubr.f32.mxu0 0.0
    %201 = vmatmul.mubr.f32.gmra.mrb[0].mxu0 %v77
    %v202 = vpop.f32.mrb[0].mxu0
    %v203 = vadd.f32 0.0, %v202
    %v204 = vpop.f32.mrb[0].mxu0
    %205 = vmatprep.mubr.f32.mxu0 0.0
    %206 = vmatmul.mubr.f32.gmra.mrb[0].mxu0 %v80
    %v207 = vpop.f32.mrb[0].mxu0
    %v208 = vadd.f32 0.0, %v207
    %v209 = vpop.f32.mrb[0].mxu0
    %210 = vmatprep.mubr.f32.mxu0 0.0
    %211 = vmatmul.mubr.f32.gmra.mrb[0].mxu0 %v83
    %v212 = vpop.f32.mrb[0].mxu0
    %v213 = vadd.f32 0.0, %v212
    %v214 = vpop.f32.mrb[0].mxu0
    %215 = vmatprep.mubr.f32.mxu0 0.0
    %216 = vmatmul.mubr.f32.gmra.mrb[0].mxu0 %v86
    %v217 = vpop.f32.mrb[0].mxu0
    %v218 = vadd.f32 0.0, %v217
    %v219 = vpop.f32.mrb[0].mxu0
    %220 = vmatprep.mubr.f32.mxu0 0.0
    %221 = vmatmul.mubr.f32.gmra.mrb[0].mxu0 %v89
    %v222 = vpop.f32.mrb[0].mxu0
    %v223 = vadd.f32 0.0, %v222
    %v224 = vpop.f32.mrb[0].mxu0
    %225 = vmatprep.mubr.f32.mxu0 0.0
    %226 = vmatmul.mubr.f32.gmra.mrb[0].mxu0 %v92
    %v227 = vpop.f32.mrb[0].mxu0
    %v228 = vadd.f32 0.0, %v227
    %v229 = vpop.f32.mrb[0].mxu0
    %230 = vmatprep.mubr.f32.mxu0 0.0
    %231 = vmatmul.mubr.f32.gmra.mrb[0].mxu0 %v95
    %v232 = vpop.f32.mrb[0].mxu0
    %v233 = vadd.f32 0.0, %v232
    %v234 = vpop.f32.mrb[0].mxu0
    %235 = vmatprep.mubr.f32.mxu0 0.0
    %236 = vmatmul.mubr.f32.gmra.mrb[0].mxu0 %v98
    %v237 = vpop.f32.mrb[0].mxu0
    %v238 = vadd.f32 0.0, %v237
    %v239 = vpop.f32.mrb[0].mxu0
    %240 = vmatprep.mubr.f32.mxu0 0.0
    %241 = vmatmul.mubr.f32.gmra.mrb[0].mxu0 %v101
    %v242 = vpop.f32.mrb[0].mxu0
    %v243 = vadd.f32 0.0, %v242
    %v244 = vpop.f32.mrb[0].mxu0
    %245 = vmatprep.mubr.f32.mxu0 0.0
    %246 = vmatmul.mubr.f32.gmra.mrb[0].mxu0 %v104
    %v247 = vpop.f32.mrb[0].mxu0
    %v248 = vadd.f32 0.0, %v247
    %v249 = vpop.f32.mrb[0].mxu0
    %250 = vdwg.mxu0
    %v251 = vmul.f32 %v41, %v173
    %v252 = vmul.f32 %v42, %v178
    %v253 = vmul.f32 %v43, %v183
    %v254 = vmul.f32 %v44, %v188
    %v255 = vmul.f32 %v45, %v193
    %v256 = vmul.f32 %v46, %v198
    %v257 = vmul.f32 %v47, %v203
    %v258 = vmul.f32 %v48, %v208
    %v259 = vmul.f32 %v49, %v213
    %v260 = vmul.f32 %v50, %v218
    %v261 = vmul.f32 %v51, %v223
    %v262 = vmul.f32 %v52, %v228
    %v263 = vmul.f32 %v53, %v233
    %v264 = vmul.f32 %v54, %v238
    %v265 = vmul.f32 %v55, %v243
    %v266 = vmul.f32 %v56, %v248
    %v267 = vsel %vm57, %v251, 0.0
    %268 = vadd.xlane.f32.xlu0 %v267
    %v269 = vpop.xlane.xlu0 %268
    %v270 = vsel %vm57, %v252, 0.0
    %271 = vadd.xlane.f32.xlu0 %v270
    %v272 = vpop.xlane.xlu0 %271
    %v273 = vsel %vm57, %v253, 0.0
    %274 = vadd.xlane.f32.xlu0 %v273
    %v275 = vpop.xlane.xlu0 %274
    %v276 = vsel %vm57, %v254, 0.0
    %277 = vadd.xlane.f32.xlu0 %v276
    %v278 = vpop.xlane.xlu0 %277
    %v279 = vsel %vm57, %v255, 0.0
    %280 = vadd.xlane.f32.xlu0 %v279
    %v281 = vpop.xlane.xlu0 %280
    %v282 = vsel %vm57, %v256, 0.0
    %283 = vadd.xlane.f32.xlu0 %v282
    %v284 = vpop.xlane.xlu0 %283
    %v285 = vsel %vm57, %v257, 0.0
    %286 = vadd.xlane.f32.xlu0 %v285
    %v287 = vpop.xlane.xlu0 %286
    %v288 = vsel %vm57, %v258, 0.0
    %289 = vadd.xlane.f32.xlu0 %v288
    %v290 = vpop.xlane.xlu0 %289
    %v291 = vsel %vm57, %v259, 0.0
    %292 = vadd.xlane.f32.xlu0 %v291
    %v293 = vpop.xlane.xlu0 %292
    %v294 = vsel %vm57, %v260, 0.0
    %295 = vadd.xlane.f32.xlu0 %v294
    %v296 = vpop.xlane.xlu0 %295
    %v297 = vsel %vm57, %v261, 0.0
    %298 = vadd.xlane.f32.xlu0 %v297
    %v299 = vpop.xlane.xlu0 %298
    %v300 = vsel %vm57, %v262, 0.0
    %301 = vadd.xlane.f32.xlu0 %v300
    %v302 = vpop.xlane.xlu0 %301
    %v303 = vsel %vm57, %v263, 0.0
    %304 = vadd.xlane.f32.xlu0 %v303
    %v305 = vpop.xlane.xlu0 %304
    %v306 = vsel %vm57, %v264, 0.0
    %307 = vadd.xlane.f32.xlu0 %v306
    %v308 = vpop.xlane.xlu0 %307
    %v309 = vsel %vm57, %v265, 0.0
    %310 = vadd.xlane.f32.xlu0 %v309
    %v311 = vpop.xlane.xlu0 %310
    %v312 = vsel %vm57, %v266, 0.0
    %313 = vadd.xlane.f32.xlu0 %v312
    %v314 = vpop.xlane.xlu0 %313
    %vm315 = vcmask 7168
    %316 = vst.msk [vmem:[#allocation2] sm:$0xff] %vm315, %v269
    %317 = vst.msk [vmem:[#allocation2 + $0x8] sm:$0xff] %vm315, %v272
    %318 = vst.msk [vmem:[#allocation2 + $0x10] sm:$0xff] %vm315, %v275
    %319 = vst.msk [vmem:[#allocation2 + $0x18] sm:$0xff] %vm315, %v278
    %320 = vst.msk [vmem:[#allocation2 + $0x20] sm:$0xff] %vm315, %v281
    %321 = vst.msk [vmem:[#allocation2 + $0x28] sm:$0xff] %vm315, %v284
    %322 = vst.msk [vmem:[#allocation2 + $0x30] sm:$0xff] %vm315, %v287
    %323 = vst.msk [vmem:[#allocation2 + $0x38] sm:$0xff] %vm315, %v290
    %324 = vst.msk [vmem:[#allocation2 + $0x40] sm:$0xff] %vm315, %v293
    %325 = vst.msk [vmem:[#allocation2 + $0x48] sm:$0xff] %vm315, %v296
    %326 = vst.msk [vmem:[#allocation2 + $0x50] sm:$0xff] %vm315, %v299
    %327 = vst.msk [vmem:[#allocation2 + $0x58] sm:$0xff] %vm315, %v302
    %328 = vst.msk [vmem:[#allocation2 + $0x60] sm:$0xff] %vm315, %v305
    %329 = vst.msk [vmem:[#allocation2 + $0x68] sm:$0xff] %vm315, %v308
    %330 = vst.msk [vmem:[#allocation2 + $0x70] sm:$0xff] %vm315, %v311
    %331 = vst.msk [vmem:[#allocation2 + $0x78] sm:$0xff] %vm315, %v314
    // Predicated region
    $region14: #{_forward_impl.1} parent=1 // pred_check
      _
    $region15: #{_forward_impl.1} parent=1 // pred_check_branch
      %333 = sbr.rel (0) target = $region17
    $region16: #{_forward_impl.1} parent=1 // pred_region
      // Predicated region
      $region18: #{_forward_impl.1} parent=16 // pred_check
        _
      $region19: #{_forward_impl.1} parent=16 // pred_check_branch
        %335 = sbr.rel (0) target = $region21
      $region20: #{_forward_impl.1} parent=16 // pred_region
        // Predicated region
        $region22: #{_forward_impl.1} parent=20 // pred_check
          _
        $region23: #{_forward_impl.1} parent=20 // pred_check_branch
          %337 = sbr.rel (0) target = $region25
        $region24: #{_forward_impl.1} parent=20 // pred_region
          // Predicated region
          $region37: #{_forward_impl.1} parent=24 // pred_check
            _
          $region38: #{_forward_impl.1} parent=24 // pred_check_branch
            %354 = sbr.rel (0) target = $region40
          $region39: #{_forward_impl.1} parent=24 // pred_region
            loop: start=0, step=1, limit=1
            $region41: #{_forward_impl.1} parent=39 // loop_pre_header
              _
            $region42: #{_forward_impl.1} parent=39 // loop_header
              %s356 = sphi 0, %s360
              %p357 = scmp.ge.s32.totalorder %s356, 1
              %s361 = sphi [#allocation2], [#allocation2]
              %s362 = sphi %s3, %s3
            $region43: #{_forward_impl.1} parent=39 // loop_header_branch
              %359 = sbr.rel (%p357) target = $region47
            $region44: #{_forward_impl.1} parent=39 // loop_body
              %v363 = vld [vmem:[%s361] sm:$0xff]
              %364 = vst [vmem:[%s362] sm:$0xff] %v363
              %v365 = vld [vmem:[%s361 + $0x8] sm:$0xff]
              %366 = vst [vmem:[%s362 + $0x8] sm:$0xff] %v365
            $region45: #{_forward_impl.1} parent=39 // loop_footer
              %s360 = sadd.s32 1, %s356
            $region46: #{_forward_impl.1} parent=39 // loop_footer_branch
              %355 = sbr.rel target = $region42
            $region47: #{_forward_impl.1} parent=39 // loop_exit
              _
          $region40: #{_forward_impl.1} parent=24 // pred_fallthru
            _
          // Predicated region
          $region48: #{_forward_impl.1} parent=24 // pred_check
            _
          $region49: #{_forward_impl.1} parent=24 // pred_check_branch
            %368 = sbr.rel target = $region51
          $region50: #{_forward_impl.1} parent=24 // pred_region
            _
          $region51: #{_forward_impl.1} parent=24 // pred_fallthru
            _
        $region25: #{_forward_impl.1} parent=20 // pred_fallthru
          _
        // Predicated region
        $region26: #{_forward_impl.1} parent=20 // pred_check
          _
        $region27: #{_forward_impl.1} parent=20 // pred_check_branch
          %339 = sbr.rel target = $region29
        $region28: #{_forward_impl.1} parent=20 // pred_region
          loop: start=0, step=1, limit=1
          $region30: #{_forward_impl.1} parent=28 // loop_pre_header
            _
          $region31: #{_forward_impl.1} parent=28 // loop_header
            %s342 = sphi 0, %s346
            %p343 = scmp.ge.s32.totalorder %s342, 1
            %s347 = sphi [#allocation2], [#allocation2]
            %s348 = sphi %s3, %s3
          $region32: #{_forward_impl.1} parent=28 // loop_header_branch
            %345 = sbr.rel (%p343) target = $region36
          $region33: #{_forward_impl.1} parent=28 // loop_body
            %v349 = vld [vmem:[%s347] sm:$0xff]
            %350 = vst [vmem:[%s348] sm:$0xff] %v349
            %v351 = vld [vmem:[%s347 + $0x8] sm:$0xff]
            %352 = vst [vmem:[%s348 + $0x8] sm:$0xff] %v351
          $region34: #{_forward_impl.1} parent=28 // loop_footer
            %s346 = sadd.s32 1, %s342
          $region35: #{_forward_impl.1} parent=28 // loop_footer_branch
            %341 = sbr.rel target = $region31
          $region36: #{_forward_impl.1} parent=28 // loop_exit
            _
        $region29: #{_forward_impl.1} parent=20 // pred_fallthru
          _
      $region21: #{_forward_impl.1} parent=16 // pred_fallthru
        _
      %369 = vnop
    $region17: #{_forward_impl.1} parent=1 // pred_fallthru
      _
    // Predicated region
    $region52: #{_forward_impl.1} parent=1 // pred_check
      _
    $region53: #{_forward_impl.1} parent=1 // pred_check_branch
      %371 = sbr.rel (0) target = $region55
    $region54: #{_forward_impl.1} parent=1 // pred_region
      _
    $region55: #{_forward_impl.1} parent=1 // pred_fallthru
      _

// kernel: _forward_impl.1
$region0: #{_forward_impl.1}
  #allocation0 [shape = 'u32[]', space=smem, size = 0x4, offset = 0x4, fixed_abs, tag = 'smem constant byte address 0x4 - core index']
  #allocation1 [shape = 'u32[144,128]{1,0:T(1,128)}', space=vmem, size = 0x12000, scoped, tag = 'internal scratch']
  %s0 = inlined_call_operand.vmem [shape: f32[16,32], index: 0, kind: input, shape index: {}]
  %s1 = inlined_call_operand.vmem [shape: f32[1,32], index: 1, kind: input, shape index: {}]
  %s2 = inlined_call_operand.vmem [shape: f32[32,32], index: 2, kind: input, shape index: {}]
  %s3 = inlined_call_operand.vmem [shape: f32[16,1], index: 3, kind: output, shape index: {}]
  %s4 = sld [smem:[#allocation0]]
  $region56: #{_forward_impl.1} parent=0
    _
  %s6 = ssub.s32 1, %s4
  %s7 = scalar_select 0, %s6, %s4
  $region1: #{_forward_impl.1} parent=0
    #allocation2 [shape = 'u8[65536]{0}', space=vmem, size = 0x10000, scoped, tag = 'output window, operand 0, single buffered']
    // Predicated region
    $region2: #{_forward_impl.1} parent=1 // pred_check
      _
    $region3: #{_forward_impl.1} parent=1 // pred_check_branch
      %9 = sbr.rel (0) target = $region5
    $region4: #{_forward_impl.1} parent=1 // pred_region
      _
    $region5: #{_forward_impl.1} parent=1 // pred_fallthru
      _
    // Predicated region
    $region6: #{_forward_impl.1} parent=1 // pred_check
      _
    $region7: #{_forward_impl.1} parent=1 // pred_check_branch
      %11 = sbr.rel (0) target = $region9
    $region8: #{_forward_impl.1} parent=1 // pred_region
      _
    $region9: #{_forward_impl.1} parent=1 // pred_fallthru
      _
    // Predicated region
    $region10: #{_forward_impl.1} parent=1 // pred_check
      _
    $region11: #{_forward_impl.1} parent=1 // pred_check_branch
      %13 = sbr.rel (0) target = $region13
    $region12: #{_forward_impl.1} parent=1 // pred_region
      _
    $region13: #{_forward_impl.1} parent=1 // pred_fallthru
      _
    %v14 = vld [vmem:[%s1] sm:$0x1]
    %v15 = vld [vmem:[%s2] sm:$0xff]
    %v16 = vld [vmem:[%s2 + $0x8] sm:$0xff]
    %v17 = vld [vmem:[%s2 + $0x10] sm:$0xff]
    %v18 = vld [vmem:[%s2 + $0x18] sm:$0xff]
    %v19 = vld [vmem:[%s0] sm:$0xff]
    %v20 = vld [vmem:[%s0 + $0x8] sm:$0xff]
    %v21 = vld [vmem:[%s0 + $0x10] sm:$0xff]
    %v22 = vld [vmem:[%s0 + $0x18] sm:$0xff]
    %v23 = vld [vmem:[%s0 + $0x20] sm:$0xff]
    %v24 = vld [vmem:[%s0 + $0x28] sm:$0xff]
    %v25 = vld [vmem:[%s0 + $0x30] sm:$0xff]
    %v26 = vld [vmem:[%s0 + $0x38] sm:$0xff]
    %v27 = vld [vmem:[%s0 + $0x40] sm:$0xff]
    %v28 = vld [vmem:[%s0 + $0x48] sm:$0xff]
    %v29 = vld [vmem:[%s0 + $0x50] sm:$0xff]
    %v30 = vld [vmem:[%s0 + $0x58] sm:$0xff]
    %v31 = vld [vmem:[%s0 + $0x60] sm:$0xff]
    %v32 = vld [vmem:[%s0 + $0x68] sm:$0xff]
    %v33 = vld [vmem:[%s0 + $0x70] sm:$0xff]
    %v34 = vld [vmem:[%s0 + $0x78] sm:$0xff]
    %v36 = vlaneseq
    %v37 = vshrl.u32 %v36, 7
    %v38 = vsub.s32 0, %v37
    %v39 = vrot.slane %v14, %v38
    %v41 = vsub.f32 %v19, %v39
    %v42 = vsub.f32 %v20, %v39
    %v43 = vsub.f32 %v21, %v39
    %v44 = vsub.f32 %v22, %v39
    %v45 = vsub.f32 %v23, %v39
    %v46 = vsub.f32 %v24, %v39
    %v47 = vsub.f32 %v25, %v39
    %v48 = vsub.f32 %v26, %v39
    %v49 = vsub.f32 %v27, %v39
    %v50 = vsub.f32 %v28, %v39
    %v51 = vsub.f32 %v29, %v39
    %v52 = vsub.f32 %v30, %v39
    %v53 = vsub.f32 %v31, %v39
    %v54 = vsub.f32 %v32, %v39
    %v55 = vsub.f32 %v33, %v39
    %v56 = vsub.f32 %v34, %v39
    %vm57 = vcmask 261120
    %v59 = vsel %vm57, %v41, 0
    %v62 = vsel %vm57, %v42, 0
    %v65 = vsel %vm57, %v43, 0
    %v68 = vsel %vm57, %v44, 0
    %v71 = vsel %vm57, %v45, 0
    %v74 = vsel %vm57, %v46, 0
    %v77 = vsel %vm57, %v47, 0
    %v80 = vsel %vm57, %v48, 0
    %v83 = vsel %vm57, %v49, 0
    %v86 = vsel %vm57, %v50, 0
    %v89 = vsel %vm57, %v51, 0
    %v92 = vsel %vm57, %v52, 0
    %v95 = vsel %vm57, %v53, 0
    %v98 = vsel %vm57, %v54, 0
    %v101 = vsel %vm57, %v55, 0
    %v104 = vsel %vm57, %v56, 0
    %106 = vmatprep.subr.mxu0 0.0
    %107 = vmatpush1.msra.mxu0 %v15
    %108 = vmatprep.subr.mxu0 0.0
    %109 = vmatpush1.msra.mxu0 %v16
    %110 = vmatprep.subr.mxu0 0.0
    %111 = vmatpush1.msra.mxu0 %v17
    %112 = vmatprep.subr.mxu0 0.0
    %113 = vmatpush1.msra.mxu0 %v18
    %114 = vmatprep.subr.mxu0 0.0
    %115 = vmatpush1.msra.mxu0 0.0
    %116 = vmatprep.subr.mxu0 0.0
    %117 = vmatpush1.msra.mxu0 0.0
    %118 = vmatprep.subr.mxu0 0.0
    %119 = vmatpush1.msra.mxu0 0.0
    %120 = vmatprep.subr.mxu0 0.0
    %121 = vmatpush1.msra.mxu0 0.0
    %122 = vmatprep.subr.mxu0 0.0
    %123 = vmatpush1.msra.mxu0 0.0
    %124 = vmatprep.subr.mxu0 0.0
    %125 = vmatpush1.msra.mxu0 0.0
    %126 = vmatprep.subr.mxu0 0.0
    %127 = vmatpush1.msra.mxu0 0.0
    %128 = vmatprep.subr.mxu0 0.0
    %129 = vmatpush1.msra.mxu0 0.0
    %130 = vmatprep.subr.mxu0 0.0
    %131 = vmatpush1.msra.mxu0 0.0
    %132 = vmatprep.subr.mxu0 0.0
    %133 = vmatpush1.msra.mxu0 0.0
    %134 = vmatprep.subr.mxu0 0.0
    %135 = vmatpush1.msra.mxu0 0.0
    %136 = vmatprep.subr.mxu0 0.0
    %137 = vmatpush1.msra.mxu0 0.0
    %138 = vmatprep.subr.mxu0 0.0
    %139 = vmatpush1.msra.mxu0 0.0
    %140 = vmatprep.subr.mxu0 0.0
    %141 = vmatpush1.msra.mxu0 0.0
    %142 = vmatprep.subr.mxu0 0.0
    %143 = vmatpush1.msra.mxu0 0.0
    %144 = vmatprep.subr.mxu0 0.0
    %145 = vmatpush1.msra.mxu0 0.0
    %146 = vmatprep.subr.mxu0 0.0
    %147 = vmatpush1.msra.mxu0 0.0
    %148 = vmatprep.subr.mxu0 0.0
    %149 = vmatpush1.msra.mxu0 0.0
    %150 = vmatprep.subr.mxu0 0.0
    %151 = vmatpush1.msra.mxu0 0.0
    %152 = vmatprep.subr.mxu0 0.0
    %153 = vmatpush1.msra.mxu0 0.0
    %154 = vmatprep.subr.mxu0 0.0
    %155 = vmatpush1.msra.mxu0 0.0
    %156 = vmatprep.subr.mxu0 0.0
    %157 = vmatpush1.msra.mxu0 0.0
    %158 = vmatprep.subr.mxu0 0.0
    %159 = vmatpush1.msra.mxu0 0.0
    %160 = vmatprep.subr.mxu0 0.0
    %161 = vmatpush1.msra.mxu0 0.0
    %162 = vmatprep.subr.mxu0 0.0
    %163 = vmatpush1.msra.mxu0 0.0
    %164 = vmatprep.subr.mxu0 0.0
    %165 = vmatpush1.msra.mxu0 0.0
    %166 = vmatprep.subr.mxu0 0.0
    %167 = vmatpush1.msra.mxu0 0.0
    %168 = vmatprep.subr.mxu0 0.0
    %169 = vmatpush1.msra.mxu0 0.0
    %170 = vmatprep.mubr.f32.mxu0 0.0
    %171 = vmatmul.mubr.f32.gmra.mrb[0].mxu0 %v59
    %v172 = vpop.f32.mrb[0].mxu0
    %v173 = vadd.f32 0.0, %v172
    %v174 = vpop.f32.mrb[0].mxu0
    %175 = vmatprep.mubr.f32.mxu0 0.0
    %176 = vmatmul.mubr.f32.gmra.mrb[0].mxu0 %v62
    %v177 = vpop.f32.mrb[0].mxu0
    %v178 = vadd.f32 0.0, %v177
    %v179 = vpop.f32.mrb[0].mxu0
    %180 = vmatprep.mubr.f32.mxu0 0.0
    %181 = vmatmul.mubr.f32.gmra.mrb[0].mxu0 %v65
    %v182 = vpop.f32.mrb[0].mxu0
    %v183 = vadd.f32 0.0, %v182
    %v184 = vpop.f32.mrb[0].mxu0
    %185 = vmatprep.mubr.f32.mxu0 0.0
    %186 = vmatmul.mubr.f32.gmra.mrb[0].mxu0 %v68
    %v187 = vpop.f32.mrb[0].mxu0
    %v188 = vadd.f32 0.0, %v187
    %v189 = vpop.f32.mrb[0].mxu0
    %190 = vmatprep.mubr.f32.mxu0 0.0
    %191 = vmatmul.mubr.f32.gmra.mrb[0].mxu0 %v71
    %v192 = vpop.f32.mrb[0].mxu0
    %v193 = vadd.f32 0.0, %v192
    %v194 = vpop.f32.mrb[0].mxu0
    %195 = vmatprep.mubr.f32.mxu0 0.0
    %196 = vmatmul.mubr.f32.gmra.mrb[0].mxu0 %v74
    %v197 = vpop.f32.mrb[0].mxu0
    %v198 = vadd.f32 0.0, %v197
    %v199 = vpop.f32.mrb[0].mxu0
    %200 = vmatprep.mubr.f32.mxu0 0.0
    %201 = vmatmul.mubr.f32.gmra.mrb[0].mxu0 %v77
    %v202 = vpop.f32.mrb[0].mxu0
    %v203 = vadd.f32 0.0, %v202
    %v204 = vpop.f32.mrb[0].mxu0
    %205 = vmatprep.mubr.f32.mxu0 0.0
    %206 = vmatmul.mubr.f32.gmra.mrb[0].mxu0 %v80
    %v207 = vpop.f32.mrb[0].mxu0
    %v208 = vadd.f32 0.0, %v207
    %v209 = vpop.f32.mrb[0].mxu0
    %210 = vmatprep.mubr.f32.mxu0 0.0
    %211 = vmatmul.mubr.f32.gmra.mrb[0].mxu0 %v83
    %v212 = vpop.f32.mrb[0].mxu0
    %v213 = vadd.f32 0.0, %v212
    %v214 = vpop.f32.mrb[0].mxu0
    %215 = vmatprep.mubr.f32.mxu0 0.0
    %216 = vmatmul.mubr.f32.gmra.mrb[0].mxu0 %v86
    %v217 = vpop.f32.mrb[0].mxu0
    %v218 = vadd.f32 0.0, %v217
    %v219 = vpop.f32.mrb[0].mxu0
    %220 = vmatprep.mubr.f32.mxu0 0.0
    %221 = vmatmul.mubr.f32.gmra.mrb[0].mxu0 %v89
    %v222 = vpop.f32.mrb[0].mxu0
    %v223 = vadd.f32 0.0, %v222
    %v224 = vpop.f32.mrb[0].mxu0
    %225 = vmatprep.mubr.f32.mxu0 0.0
    %226 = vmatmul.mubr.f32.gmra.mrb[0].mxu0 %v92
    %v227 = vpop.f32.mrb[0].mxu0
    %v228 = vadd.f32 0.0, %v227
    %v229 = vpop.f32.mrb[0].mxu0
    %230 = vmatprep.mubr.f32.mxu0 0.0
    %231 = vmatmul.mubr.f32.gmra.mrb[0].mxu0 %v95
    %v232 = vpop.f32.mrb[0].mxu0
    %v233 = vadd.f32 0.0, %v232
    %v234 = vpop.f32.mrb[0].mxu0
    %235 = vmatprep.mubr.f32.mxu0 0.0
    %236 = vmatmul.mubr.f32.gmra.mrb[0].mxu0 %v98
    %v237 = vpop.f32.mrb[0].mxu0
    %v238 = vadd.f32 0.0, %v237
    %v239 = vpop.f32.mrb[0].mxu0
    %240 = vmatprep.mubr.f32.mxu0 0.0
    %241 = vmatmul.mubr.f32.gmra.mrb[0].mxu0 %v101
    %v242 = vpop.f32.mrb[0].mxu0
    %v243 = vadd.f32 0.0, %v242
    %v244 = vpop.f32.mrb[0].mxu0
    %245 = vmatprep.mubr.f32.mxu0 0.0
    %246 = vmatmul.mubr.f32.gmra.mrb[0].mxu0 %v104
    %v247 = vpop.f32.mrb[0].mxu0
    %v248 = vadd.f32 0.0, %v247
    %v249 = vpop.f32.mrb[0].mxu0
    %250 = vdwg.mxu0
    %v251 = vmul.f32 %v41, %v173
    %v252 = vmul.f32 %v42, %v178
    %v253 = vmul.f32 %v43, %v183
    %v254 = vmul.f32 %v44, %v188
    %v255 = vmul.f32 %v45, %v193
    %v256 = vmul.f32 %v46, %v198
    %v257 = vmul.f32 %v47, %v203
    %v258 = vmul.f32 %v48, %v208
    %v259 = vmul.f32 %v49, %v213
    %v260 = vmul.f32 %v50, %v218
    %v261 = vmul.f32 %v51, %v223
    %v262 = vmul.f32 %v52, %v228
    %v263 = vmul.f32 %v53, %v233
    %v264 = vmul.f32 %v54, %v238
    %v265 = vmul.f32 %v55, %v243
    %v266 = vmul.f32 %v56, %v248
    %v267 = vsel %vm57, %v251, 0.0
    %268 = vadd.xlane.f32.xlu0 %v267
    %v269 = vpop.xlane.xlu0 %268
    %v270 = vsel %vm57, %v252, 0.0
    %271 = vadd.xlane.f32.xlu0 %v270
    %v272 = vpop.xlane.xlu0 %271
    %v273 = vsel %vm57, %v253, 0.0
    %274 = vadd.xlane.f32.xlu0 %v273
    %v275 = vpop.xlane.xlu0 %274
    %v276 = vsel %vm57, %v254, 0.0
    %277 = vadd.xlane.f32.xlu0 %v276
    %v278 = vpop.xlane.xlu0 %277
    %v279 = vsel %vm57, %v255, 0.0
    %280 = vadd.xlane.f32.xlu0 %v279
    %v281 = vpop.xlane.xlu0 %280
    %v282 = vsel %vm57, %v256, 0.0
    %283 = vadd.xlane.f32.xlu0 %v282
    %v284 = vpop.xlane.xlu0 %283
    %v285 = vsel %vm57, %v257, 0.0
    %286 = vadd.xlane.f32.xlu0 %v285
    %v287 = vpop.xlane.xlu0 %286
    %v288 = vsel %vm57, %v258, 0.0
    %289 = vadd.xlane.f32.xlu0 %v288
    %v290 = vpop.xlane.xlu0 %289
    %v291 = vsel %vm57, %v259, 0.0
    %292 = vadd.xlane.f32.xlu0 %v291
    %v293 = vpop.xlane.xlu0 %292
    %v294 = vsel %vm57, %v260, 0.0
    %295 = vadd.xlane.f32.xlu0 %v294
    %v296 = vpop.xlane.xlu0 %295
    %v297 = vsel %vm57, %v261, 0.0
    %298 = vadd.xlane.f32.xlu0 %v297
    %v299 = vpop.xlane.xlu0 %298
    %v300 = vsel %vm57, %v262, 0.0
    %301 = vadd.xlane.f32.xlu0 %v300
    %v302 = vpop.xlane.xlu0 %301
    %v303 = vsel %vm57, %v263, 0.0
    %304 = vadd.xlane.f32.xlu0 %v303
    %v305 = vpop.xlane.xlu0 %304
    %v306 = vsel %vm57, %v264, 0.0
    %307 = vadd.xlane.f32.xlu0 %v306
    %v308 = vpop.xlane.xlu0 %307
    %v309 = vsel %vm57, %v265, 0.0
    %310 = vadd.xlane.f32.xlu0 %v309
    %v311 = vpop.xlane.xlu0 %310
    %v312 = vsel %vm57, %v266, 0.0
    %313 = vadd.xlane.f32.xlu0 %v312
    %v314 = vpop.xlane.xlu0 %313
    %vm315 = vcmask 7168
    %316 = vst.msk [vmem:[#allocation2] sm:$0xff] %vm315, %v269
    %317 = vst.msk [vmem:[#allocation2 + $0x8] sm:$0xff] %vm315, %v272
    %318 = vst.msk [vmem:[#allocation2 + $0x10] sm:$0xff] %vm315, %v275
    %319 = vst.msk [vmem:[#allocation2 + $0x18] sm:$0xff] %vm315, %v278
    %320 = vst.msk [vmem:[#allocation2 + $0x20] sm:$0xff] %vm315, %v281
    %321 = vst.msk [vmem:[#allocation2 + $0x28] sm:$0xff] %vm315, %v284
    %322 = vst.msk [vmem:[#allocation2 + $0x30] sm:$0xff] %vm315, %v287
    %323 = vst.msk [vmem:[#allocation2 + $0x38] sm:$0xff] %vm315, %v290
    %324 = vst.msk [vmem:[#allocation2 + $0x40] sm:$0xff] %vm315, %v293
    %325 = vst.msk [vmem:[#allocation2 + $0x48] sm:$0xff] %vm315, %v296
    %326 = vst.msk [vmem:[#allocation2 + $0x50] sm:$0xff] %vm315, %v299
    %327 = vst.msk [vmem:[#allocation2 + $0x58] sm:$0xff] %vm315, %v302
    %328 = vst.msk [vmem:[#allocation2 + $0x60] sm:$0xff] %vm315, %v305
    %329 = vst.msk [vmem:[#allocation2 + $0x68] sm:$0xff] %vm315, %v308
    %330 = vst.msk [vmem:[#allocation2 + $0x70] sm:$0xff] %vm315, %v311
    %331 = vst.msk [vmem:[#allocation2 + $0x78] sm:$0xff] %vm315, %v314
    // Predicated region
    $region14: #{_forward_impl.1} parent=1 // pred_check
      _
    $region15: #{_forward_impl.1} parent=1 // pred_check_branch
      %333 = sbr.rel (0) target = $region17
    $region16: #{_forward_impl.1} parent=1 // pred_region
      // Predicated region
      $region18: #{_forward_impl.1} parent=16 // pred_check
        _
      $region19: #{_forward_impl.1} parent=16 // pred_check_branch
        %335 = sbr.rel (0) target = $region21
      $region20: #{_forward_impl.1} parent=16 // pred_region
        // Predicated region
        $region22: #{_forward_impl.1} parent=20 // pred_check
          _
        $region23: #{_forward_impl.1} parent=20 // pred_check_branch
          %337 = sbr.rel (0) target = $region25
        $region24: #{_forward_impl.1} parent=20 // pred_region
          // Predicated region
          $region37: #{_forward_impl.1} parent=24 // pred_check
            _
          $region38: #{_forward_impl.1} parent=24 // pred_check_branch
            %354 = sbr.rel (0) target = $region40
          $region39: #{_forward_impl.1} parent=24 // pred_region
            loop: start=0, step=1, limit=1
            $region41: #{_forward_impl.1} parent=39 // loop_pre_header
              _
            $region42: #{_forward_impl.1} parent=39 // loop_header
              %s356 = sphi 0, %s360
              %p357 = scmp.ge.s32.totalorder %s356, 1
              %s361 = sphi [#allocation2], [#allocation2]
              %s362 = sphi %s3, %s3
            $region43: #{_forward_impl.1} parent=39 // loop_header_branch
              %359 = sbr.rel (%p357) target = $region47
            $region44: #{_forward_impl.1} parent=39 // loop_body
              %v363 = vld [vmem:[%s361] sm:$0xff]
              %364 = vst [vmem:[%s362] sm:$0xff] %v363
              %v365 = vld [vmem:[%s361 + $0x8] sm:$0xff]
              %366 = vst [vmem:[%s362 + $0x8] sm:$0xff] %v365
            $region45: #{_forward_impl.1} parent=39 // loop_footer
              %s360 = sadd.s32 1, %s356
            $region46: #{_forward_impl.1} parent=39 // loop_footer_branch
              %355 = sbr.rel target = $region42
            $region47: #{_forward_impl.1} parent=39 // loop_exit
              _
          $region40: #{_forward_impl.1} parent=24 // pred_fallthru
            _
          // Predicated region
          $region48: #{_forward_impl.1} parent=24 // pred_check
            _
          $region49: #{_forward_impl.1} parent=24 // pred_check_branch
            %368 = sbr.rel target = $region51
          $region50: #{_forward_impl.1} parent=24 // pred_region
            _
          $region51: #{_forward_impl.1} parent=24 // pred_fallthru
            _
        $region25: #{_forward_impl.1} parent=20 // pred_fallthru
          _
        // Predicated region
        $region26: #{_forward_impl.1} parent=20 // pred_check
          _
        $region27: #{_forward_impl.1} parent=20 // pred_check_branch
          %339 = sbr.rel target = $region29
        $region28: #{_forward_impl.1} parent=20 // pred_region
          loop: start=0, step=1, limit=1
          $region30: #{_forward_impl.1} parent=28 // loop_pre_header
            _
          $region31: #{_forward_impl.1} parent=28 // loop_header
            %s342 = sphi 0, %s346
            %p343 = scmp.ge.s32.totalorder %s342, 1
            %s347 = sphi [#allocation2], [#allocation2]
            %s348 = sphi %s3, %s3
          $region32: #{_forward_impl.1} parent=28 // loop_header_branch
            %345 = sbr.rel (%p343) target = $region36
          $region33: #{_forward_impl.1} parent=28 // loop_body
            %v349 = vld [vmem:[%s347] sm:$0xff]
            %350 = vst [vmem:[%s348] sm:$0xff] %v349
            %v351 = vld [vmem:[%s347 + $0x8] sm:$0xff]
            %352 = vst [vmem:[%s348 + $0x8] sm:$0xff] %v351
          $region34: #{_forward_impl.1} parent=28 // loop_footer
            %s346 = sadd.s32 1, %s342
          $region35: #{_forward_impl.1} parent=28 // loop_footer_branch
            %341 = sbr.rel target = $region31
          $region36: #{_forward_impl.1} parent=28 // loop_exit
            _
        $region29: #{_forward_impl.1} parent=20 // pred_fallthru
          _
      $region21: #{_forward_impl.1} parent=16 // pred_fallthru
        _
      %369 = vnop
    $region17: #{_forward_impl.1} parent=1 // pred_fallthru
      _
    // Predicated region
    $region52: #{_forward_impl.1} parent=1 // pred_check
      _
    $region53: #{_forward_impl.1} parent=1 // pred_check_branch
      %371 = sbr.rel (0) target = $region55
    $region54: #{_forward_impl.1} parent=1 // pred_region
      _
    $region55: #{_forward_impl.1} parent=1 // pred_fallthru
      _

</llo_original>
